<compile_context>
chip_gen: v6e
topology: v6e:2x2x1
jax: 0.10.0
libtpu: 0.0.40
codegen_flags: <defaults>
</compile_context>

<pallas_src>
import math

import jax
import jax.numpy as jnp
from jax.experimental import pallas as pl
from jax.experimental.pallas import tpu as pltpu


def _lovasz_kernel(gts_ref, negerr_ref, fg_ref, o_ref,
                   carry_cumfg, carry_jac, acc_ref):
    """One P-tile of the streaming Lovasz-Softmax reduction.

    gts_ref    : [C, 1]   per-class foreground totals over the FULL P (hoisted)
    negerr_ref : [C, TP]  -(descending-sorted |fg - p_c|) for this tile
    fg_ref     : [C, TP]  fg permuted by the same sort
    o_ref      : [1, 1]   scalar loss (written at the last grid step)
    carry_*    : [C, 1]   running cumsum(fg) / previous jaccard carried across tiles
    acc_ref    : [C, 1]   per-class running dot(errors_sorted, lovasz_grad)
    """
    k = pl.program_id(0)
    C, TP = fg_ref.shape

    @pl.when(k == 0)
    def _():
        carry_cumfg[...] = jnp.zeros_like(carry_cumfg)
        carry_jac[...] = jnp.zeros_like(carry_jac)
        acc_ref[...] = jnp.zeros_like(acc_ref)

    fg = fg_ref[...]                 # [C, TP]
    errors = -negerr_ref[...]        # [C, TP] (negation fused here, VPU filler)
    gts = gts_ref[...]               # [C, 1]

    colidx = jax.lax.broadcasted_iota(jnp.int32, (C, TP), 1)

    # In-tile inclusive prefix sum of fg: ceil(log2(TP))-step shift-and-add scan.
    # pltpu.roll goes to the XLU slot, the masked add to the VPU slot.
    cs = fg
    shift = 1
    while shift < TP:
        shifted = pltpu.roll(cs, shift=shift, axis=1)
        shifted = jnp.where(colidx >= shift, shifted, 0.0)
        cs = cs + shifted
        shift *= 2

    cum_fg = carry_cumfg[...] + cs                        # global cumsum(fg)
    pos = (k * TP + colidx + 1).astype(jnp.float32)       # global 1-based index

    intersection = gts - cum_fg                           # gts - cumsum(fg)
    union = gts + (pos - cum_fg)                          # gts + cumsum(1 - fg) >= 1
    jaccard = 1.0 - intersection * pl.reciprocal(union, approx=False)

    # lovasz_grad finite difference jaccard[i] - jaccard[i-1]; the previous
    # tile's last jaccard is carried into column 0 (0 for the very first tile).
    prev = pltpu.roll(jaccard, shift=1, axis=1)
    prev = jnp.where(colidx == 0, carry_jac[...], prev)
    grad = jaccard - prev

    acc_ref[...] += jnp.sum(errors * grad, axis=1, keepdims=True)

    carry_cumfg[...] = cum_fg[:, TP - 1:TP]
    carry_jac[...] = jaccard[:, TP - 1:TP]

    @pl.when(k == pl.num_programs(0) - 1)
    def _():
        present = (gts > 0.0).astype(jnp.float32)          # classes='present'
        total = jnp.sum(acc_ref[...] * present)
        count = jnp.sum(present)
        loss = jnp.where(count > 0.0, total / count, 0.0)  # empty mean -> 0
        o_ref[...] = jnp.broadcast_to(loss, (1, 1))


def lovasz_loss(probas, labels, *, max_tile_p=2048):
    """probas: [B, C, H, W] probabilities in [0, 1]; labels: [B, H, W] ints in [0, C)."""
    # TODO(synk): per_image=True and ignore-label filtering are not implemented
    # (the forward defaults per_image=False, ignore=None are what this covers).
    B, C, H, W = probas.shape
    P = B * H * W

    # flatten_probas: only the per-pixel pairing of probas/labels matters for the
    # loss, so flatten straight to [C, P] (no [P, C] intermediate + transpose).
    probas_cp = jnp.transpose(probas, (1, 0, 2, 3)).reshape(C, P).astype(jnp.float32)
    labels_flat = labels.reshape(P)

    fg = (labels_flat[None, :] ==
          jnp.arange(C, dtype=labels_flat.dtype)[:, None]).astype(jnp.float32)  # [C, P]
    neg_errors = -jnp.abs(fg - probas_cp)                                        # [C, P]

    # One multi-operand ascending sort of -errors (== descending errors) carrying
    # fg as payload; replaces argsort + two take_along_axis gathers.
    # TODO(synk): the sort itself has no Pallas TPU lowering; it stays in XLA.
    neg_sorted, fg_sorted = jax.lax.sort((neg_errors, fg), dimension=1,
                                         is_stable=False, num_keys=1)

    # Per-class totals over the full P, hoisted out of the kernel.
    gts = jnp.sum(fg, axis=1, keepdims=True)                                     # [C, 1]

    # Tile size: smallest 128-multiple covering P, capped by max_tile_p and by a
    # ~8 MiB VMEM budget (2 streamed inputs x 2 pipeline buffers x C x TP x 4 B).
    p_128 = ((P + 127) // 128) * 128
    vmem_cap = max(128, ((8 * 1024 * 1024) // (16 * C)) // 128 * 128)
    TP = max(128, min(int(max_tile_p), p_128, vmem_cap))
    assert TP % 128 == 0, "tile size must be a multiple of 128 (lane width)"

    P_pad = ((P + TP - 1) // TP) * TP
    if P_pad != P:
        # Tail pad with errors=0 (neg=0) / fg=0: contributes exactly 0 to every
        # per-class dot product and never feeds back into real positions.
        pad = P_pad - P
        neg_sorted = jnp.pad(neg_sorted, ((0, 0), (0, pad)))
        fg_sorted = jnp.pad(fg_sorted, ((0, 0), (0, pad)))
    num_tiles = P_pad // TP

    log2_tp = max(1, int(math.ceil(math.log2(TP))))
    cost = pl.CostEstimate(
        flops=int(C * P_pad * (3 * log2_tp + 12)),
        transcendentals=int(C * P_pad),
        bytes_accessed=int(2 * C * P_pad * 4 + C * 4 + 4),
    )

    out = pl.pallas_call(
        _lovasz_kernel,
        out_shape=jax.ShapeDtypeStruct((1, 1), jnp.float32),
        grid=(num_tiles,),
        in_specs=[
            pl.BlockSpec((C, 1), lambda k: (0, 0)),     # gts (small, re-used)
            pl.BlockSpec((C, TP), lambda k: (0, k)),    # -errors_sorted tile
            pl.BlockSpec((C, TP), lambda k: (0, k)),    # fg_sorted tile
        ],
        out_specs=pl.BlockSpec((1, 1), lambda k: (0, 0)),
        scratch_shapes=[
            pltpu.VMEM((C, 1), jnp.float32),   # carry: running cumsum(fg)
            pltpu.VMEM((C, 1), jnp.float32),   # carry: previous tile's last jaccard
            pltpu.VMEM((C, 1), jnp.float32),   # per-class loss accumulator
        ],
        compiler_params=pltpu.CompilerParams(
            dimension_semantics=("arbitrary",),   # serial prefix-sum carry over P
        ),
        cost_estimate=cost,
    )(gts, neg_sorted, fg_sorted)
    return out[0, 0]


def _lovasz_loss_ref(probas, labels):
    """Pure-JAX reference (classes='present', per_image=False, ignore=None)."""
    B, C, H, W = probas.shape
    P = B * H * W
    pc = jnp.transpose(probas, (1, 0, 2, 3)).reshape(C, P).astype(jnp.float32)
    lab = labels.reshape(P)
    fg = (lab[None, :] == jnp.arange(C, dtype=lab.dtype)[:, None]).astype(jnp.float32)
    errors = jnp.abs(fg - pc)
    order = jnp.argsort(-errors, axis=1)
    errors_sorted = jnp.take_along_axis(errors, order, axis=1)
    fg_sorted = jnp.take_along_axis(fg, order, axis=1)
    gts = jnp.sum(fg_sorted, axis=1, keepdims=True)
    inter = gts - jnp.cumsum(fg_sorted, axis=1)
    union = gts + jnp.cumsum(1.0 - fg_sorted, axis=1)
    jacc = 1.0 - inter / union
    grad = jnp.concatenate([jacc[:, :1], jacc[:, 1:] - jacc[:, :-1]], axis=1)
    per_class = jnp.sum(errors_sorted * grad, axis=1)
    present = (gts[:, 0] > 0).astype(jnp.float32)
    count = jnp.sum(present)
    return jnp.where(count > 0, jnp.sum(per_class * present) / count, 0.0)


if __name__ == "__main__":
    key = jax.random.PRNGKey(0)
    k1, k2 = jax.random.split(key)

    B, C, H, W = 2, 4, 16, 16
    # probabilities in [0, 1] (the module interprets inputs as probabilities)
    probas = jax.random.uniform(k1, (B, C, H, W), dtype=jnp.float32)
    labels = jax.random.randint(k2, (B, H, W), 0, C, dtype=jnp.int32)

    loss = jax.jit(lovasz_loss)(probas, labels)
    jax.block_until_ready(loss)

    ref = _lovasz_loss_ref(probas, labels)
    assert loss.shape == () and bool(jnp.isfinite(loss))
    assert abs(float(loss) - float(ref)) < 1e-4, (float(loss), float(ref))
    print("KERNEL_OK")
</pallas_src>

<mosaic_0001>
module attributes {stable_mosaic.version = 11 : i64} {
  func.func @_lovasz_kernel(%arg0: i32, %arg1: memref<4x1xf32, #tpu.memory_space<vmem>>, %arg2: memref<4x512xf32, #tpu.memory_space<vmem>>, %arg3: memref<4x512xf32, #tpu.memory_space<vmem>>, %arg4: memref<1x1xf32, #tpu.memory_space<vmem>>, %arg5: memref<4x1xf32, #tpu.memory_space<vmem>>, %arg6: memref<4x1xf32, #tpu.memory_space<vmem>>, %arg7: memref<4x1xf32, #tpu.memory_space<vmem>>) attributes {dimension_semantics = [#tpu.dimension_semantics<arbitrary>], iteration_bounds = array<i64: 1>, scalar_prefetch = 0 : i64, scratch_operands = 3 : i64, tpu.core_type = #tpu.core_type<tc>, window_params = [{pipeline_mode = #tpu.pipeline_mode<synchronous>, transform_indices = @transform_0, window_bounds = array<i64: 4, 1>}, {transform_indices = @transform_1, window_bounds = array<i64: 4, 512>}, {transform_indices = @transform_2, window_bounds = array<i64: 4, 512>}, {pipeline_mode = #tpu.pipeline_mode<synchronous>, transform_indices = @transform_3, window_bounds = array<i64: 1, 1>}]} {
    %c0_i32 = arith.constant 0 : i32
    %0 = arith.cmpi eq, %arg0, %c0_i32 : i32
    %1 = arith.extui %0 : i1 to i32
    %c0_i32_0 = arith.constant 0 : i32
    %2 = arith.cmpi ne, %1, %c0_i32_0 : i32
    scf.if %2 {
      %cst_43 = arith.constant 0.000000e+00 : f32
      %102 = vector.broadcast %cst_43 : f32 to vector<4x1xf32>
      %c0_44 = arith.constant 0 : index
      %c0_45 = arith.constant 0 : index
      %103 = vector.load %arg5[%c0_44, %c0_45] : memref<4x1xf32, #tpu.memory_space<vmem>>, vector<4x1xf32>
      tpu.vector_store %arg5[%c0_44, %c0_45], %102 {strides = array<i32>} : memref<4x1xf32, #tpu.memory_space<vmem>>, vector<4x1xf32>,
      %cst_46 = arith.constant 0.000000e+00 : f32
      %104 = vector.broadcast %cst_46 : f32 to vector<4x1xf32>
      %c0_47 = arith.constant 0 : index
      %c0_48 = arith.constant 0 : index
      %105 = vector.load %arg6[%c0_47, %c0_48] : memref<4x1xf32, #tpu.memory_space<vmem>>, vector<4x1xf32>
      tpu.vector_store %arg6[%c0_47, %c0_48], %104 {strides = array<i32>} : memref<4x1xf32, #tpu.memory_space<vmem>>, vector<4x1xf32>,
      %cst_49 = arith.constant 0.000000e+00 : f32
      %106 = vector.broadcast %cst_49 : f32 to vector<4x1xf32>
      %c0_50 = arith.constant 0 : index
      %c0_51 = arith.constant 0 : index
      %107 = vector.load %arg7[%c0_50, %c0_51] : memref<4x1xf32, #tpu.memory_space<vmem>>, vector<4x1xf32>
      tpu.vector_store %arg7[%c0_50, %c0_51], %106 {strides = array<i32>} : memref<4x1xf32, #tpu.memory_space<vmem>>, vector<4x1xf32>,
    } else {
    }
    %c0 = arith.constant 0 : index
    %c0_1 = arith.constant 0 : index
    %3 = vector.load %arg3[%c0, %c0_1] : memref<4x512xf32, #tpu.memory_space<vmem>>, vector<4x512xf32>
    %c0_2 = arith.constant 0 : index
    %c0_3 = arith.constant 0 : index
    %4 = vector.load %arg2[%c0_2, %c0_3] : memref<4x512xf32, #tpu.memory_space<vmem>>, vector<4x512xf32>
    %cst = arith.constant 0.000000e+00 : f32
    %5 = vector.broadcast %cst : f32 to vector<4x512xf32>
    %6 = arith.subf %5, %4 : vector<4x512xf32>
    %c0_4 = arith.constant 0 : index
    %c0_5 = arith.constant 0 : index
    %7 = vector.load %arg1[%c0_4, %c0_5] : memref<4x1xf32, #tpu.memory_space<vmem>>, vector<4x1xf32>
    %8 = tpu.iota {dimensions = array<i32: 1>} : vector<4x512xi32>
    %c1_i32 = arith.constant 1 : i32
    %9 = tpu.dynamic_rotate %3 by %c1_i32 dim 1 : vector<4x512xf32>, i32 -> vector<4x512xf32>
    %c1_i32_6 = arith.constant 1 : i32
    %10 = vector.broadcast %c1_i32_6 : i32 to vector<4x512xi32>
    %11 = arith.cmpi sge, %8, %10 : vector<4x512xi32>
    %cst_7 = arith.constant 0.000000e+00 : f32
    %12 = vector.broadcast %cst_7 : f32 to vector<4x512xf32>
    %13 = arith.select %11, %9, %12 : vector<4x512xi1>, vector<4x512xf32>
    %14 = arith.addf %3, %13 : vector<4x512xf32>
    %c2_i32 = arith.constant 2 : i32
    %15 = tpu.dynamic_rotate %14 by %c2_i32 dim 1 : vector<4x512xf32>, i32 -> vector<4x512xf32>
    %c2_i32_8 = arith.constant 2 : i32
    %16 = vector.broadcast %c2_i32_8 : i32 to vector<4x512xi32>
    %17 = arith.cmpi sge, %8, %16 : vector<4x512xi32>
    %cst_9 = arith.constant 0.000000e+00 : f32
    %18 = vector.broadcast %cst_9 : f32 to vector<4x512xf32>
    %19 = arith.select %17, %15, %18 : vector<4x512xi1>, vector<4x512xf32>
    %20 = arith.addf %14, %19 : vector<4x512xf32>
    %c4_i32 = arith.constant 4 : i32
    %21 = tpu.dynamic_rotate %20 by %c4_i32 dim 1 : vector<4x512xf32>, i32 -> vector<4x512xf32>
    %c4_i32_10 = arith.constant 4 : i32
    %22 = vector.broadcast %c4_i32_10 : i32 to vector<4x512xi32>
    %23 = arith.cmpi sge, %8, %22 : vector<4x512xi32>
    %cst_11 = arith.constant 0.000000e+00 : f32
    %24 = vector.broadcast %cst_11 : f32 to vector<4x512xf32>
    %25 = arith.select %23, %21, %24 : vector<4x512xi1>, vector<4x512xf32>
    %26 = arith.addf %20, %25 : vector<4x512xf32>
    %c8_i32 = arith.constant 8 : i32
    %27 = tpu.dynamic_rotate %26 by %c8_i32 dim 1 : vector<4x512xf32>, i32 -> vector<4x512xf32>
    %c8_i32_12 = arith.constant 8 : i32
    %28 = vector.broadcast %c8_i32_12 : i32 to vector<4x512xi32>
    %29 = arith.cmpi sge, %8, %28 : vector<4x512xi32>
    %cst_13 = arith.constant 0.000000e+00 : f32
    %30 = vector.broadcast %cst_13 : f32 to vector<4x512xf32>
    %31 = arith.select %29, %27, %30 : vector<4x512xi1>, vector<4x512xf32>
    %32 = arith.addf %26, %31 : vector<4x512xf32>
    %c16_i32 = arith.constant 16 : i32
    %33 = tpu.dynamic_rotate %32 by %c16_i32 dim 1 : vector<4x512xf32>, i32 -> vector<4x512xf32>
    %c16_i32_14 = arith.constant 16 : i32
    %34 = vector.broadcast %c16_i32_14 : i32 to vector<4x512xi32>
    %35 = arith.cmpi sge, %8, %34 : vector<4x512xi32>
    %cst_15 = arith.constant 0.000000e+00 : f32
    %36 = vector.broadcast %cst_15 : f32 to vector<4x512xf32>
    %37 = arith.select %35, %33, %36 : vector<4x512xi1>, vector<4x512xf32>
    %38 = arith.addf %32, %37 : vector<4x512xf32>
    %c32_i32 = arith.constant 32 : i32
    %39 = tpu.dynamic_rotate %38 by %c32_i32 dim 1 : vector<4x512xf32>, i32 -> vector<4x512xf32>
    %c32_i32_16 = arith.constant 32 : i32
    %40 = vector.broadcast %c32_i32_16 : i32 to vector<4x512xi32>
    %41 = arith.cmpi sge, %8, %40 : vector<4x512xi32>
    %cst_17 = arith.constant 0.000000e+00 : f32
    %42 = vector.broadcast %cst_17 : f32 to vector<4x512xf32>
    %43 = arith.select %41, %39, %42 : vector<4x512xi1>, vector<4x512xf32>
    %44 = arith.addf %38, %43 : vector<4x512xf32>
    %c64_i32 = arith.constant 64 : i32
    %45 = tpu.dynamic_rotate %44 by %c64_i32 dim 1 : vector<4x512xf32>, i32 -> vector<4x512xf32>
    %c64_i32_18 = arith.constant 64 : i32
    %46 = vector.broadcast %c64_i32_18 : i32 to vector<4x512xi32>
    %47 = arith.cmpi sge, %8, %46 : vector<4x512xi32>
    %cst_19 = arith.constant 0.000000e+00 : f32
    %48 = vector.broadcast %cst_19 : f32 to vector<4x512xf32>
    %49 = arith.select %47, %45, %48 : vector<4x512xi1>, vector<4x512xf32>
    %50 = arith.addf %44, %49 : vector<4x512xf32>
    %c128_i32 = arith.constant 128 : i32
    %51 = tpu.dynamic_rotate %50 by %c128_i32 dim 1 : vector<4x512xf32>, i32 -> vector<4x512xf32>
    %c128_i32_20 = arith.constant 128 : i32
    %52 = vector.broadcast %c128_i32_20 : i32 to vector<4x512xi32>
    %53 = arith.cmpi sge, %8, %52 : vector<4x512xi32>
    %cst_21 = arith.constant 0.000000e+00 : f32
    %54 = vector.broadcast %cst_21 : f32 to vector<4x512xf32>
    %55 = arith.select %53, %51, %54 : vector<4x512xi1>, vector<4x512xf32>
    %56 = arith.addf %50, %55 : vector<4x512xf32>
    %c256_i32 = arith.constant 256 : i32
    %57 = tpu.dynamic_rotate %56 by %c256_i32 dim 1 : vector<4x512xf32>, i32 -> vector<4x512xf32>
    %c256_i32_22 = arith.constant 256 : i32
    %58 = vector.broadcast %c256_i32_22 : i32 to vector<4x512xi32>
    %59 = arith.cmpi sge, %8, %58 : vector<4x512xi32>
    %cst_23 = arith.constant 0.000000e+00 : f32
    %60 = vector.broadcast %cst_23 : f32 to vector<4x512xf32>
    %61 = arith.select %59, %57, %60 : vector<4x512xi1>, vector<4x512xf32>
    %62 = arith.addf %56, %61 : vector<4x512xf32>
    %c0_24 = arith.constant 0 : index
    %c0_25 = arith.constant 0 : index
    %63 = vector.load %arg5[%c0_24, %c0_25] : memref<4x1xf32, #tpu.memory_space<vmem>>, vector<4x1xf32>
    %64 = vector.broadcast %63 : vector<4x1xf32> to vector<4x512xf32>
    %65 = arith.addf %64, %62 : vector<4x512xf32>
    %c512_i32 = arith.constant 512 : i32
    %66 = arith.muli %arg0, %c512_i32 : i32
    %67 = vector.broadcast %66 : i32 to vector<4x512xi32>
    %68 = arith.addi %67, %8 : vector<4x512xi32>
    %c1_i32_26 = arith.constant 1 : i32
    %69 = vector.broadcast %c1_i32_26 : i32 to vector<4x512xi32>
    %70 = arith.addi %68, %69 : vector<4x512xi32>
    %71 = arith.sitofp %70 : vector<4x512xi32> to vector<4x512xf32>
    %72 = vector.broadcast %7 : vector<4x1xf32> to vector<4x512xf32>
    %73 = arith.subf %72, %65 : vector<4x512xf32>
    %74 = arith.subf %71, %65 : vector<4x512xf32>
    %75 = vector.broadcast %7 : vector<4x1xf32> to vector<4x512xf32>
    %76 = arith.addf %75, %74 : vector<4x512xf32>
    %77 = tpu.reciprocal %76 : vector<4x512xf32> -> vector<4x512xf32>
    %78 = arith.mulf %73, %77 : vector<4x512xf32>
    %cst_27 = arith.constant 1.000000e+00 : f32
    %79 = vector.broadcast %cst_27 : f32 to vector<4x512xf32>
    %80 = arith.subf %79, %78 : vector<4x512xf32>
    %c1_i32_28 = arith.constant 1 : i32
    %81 = tpu.dynamic_rotate %80 by %c1_i32_28 dim 1 : vector<4x512xf32>, i32 -> vector<4x512xf32>
    %c0_i32_29 = arith.constant 0 : i32
    %82 = vector.broadcast %c0_i32_29 : i32 to vector<4x512xi32>
    %83 = arith.cmpi eq, %8, %82 : vector<4x512xi32>
    %c0_30 = arith.constant 0 : index
    %c0_31 = arith.constant 0 : index
    %84 = vector.load %arg6[%c0_30, %c0_31] : memref<4x1xf32, #tpu.memory_space<vmem>>, vector<4x1xf32>
    %85 = vector.shape_cast %84 : vector<4x1xf32> to vector<4x1xf32>
    %86 = vector.broadcast %85 : vector<4x1xf32> to vector<4x512xf32>
    %87 = arith.select %83, %86, %81 : vector<4x512xi1>, vector<4x512xf32>
    %88 = arith.subf %80, %87 : vector<4x512xf32>
    %c0_32 = arith.constant 0 : index
    %c0_33 = arith.constant 0 : index
    %89 = vector.load %arg7[%c0_32, %c0_33] : memref<4x1xf32, #tpu.memory_space<vmem>>, vector<4x1xf32>
    %90 = arith.mulf %6, %88 : vector<4x512xf32>
    %cst_34 = arith.constant dense<0.000000e+00> : vector<4xf32>
    %91 = vector.multi_reduction <add>, %90, %cst_34 [1] : vector<4x512xf32> to vector<4xf32>
    %92 = vector.shape_cast %91 : vector<4xf32> to vector<4x1xf32>
    %93 = arith.addf %89, %92 : vector<4x1xf32>
    %c0_35 = arith.constant 0 : index
    %c0_36 = arith.constant 0 : index
    %94 = vector.load %arg7[%c0_35, %c0_36] : memref<4x1xf32, #tpu.memory_space<vmem>>, vector<4x1xf32>
    tpu.vector_store %arg7[%c0_35, %c0_36], %93 {strides = array<i32>} : memref<4x1xf32, #tpu.memory_space<vmem>>, vector<4x1xf32>,
    %95 = vector.extract_strided_slice %65 {offsets = [0, 511], sizes = [4, 1], strides = [1, 1]} : vector<4x512xf32> to vector<4x1xf32>
    %c0_37 = arith.constant 0 : index
    %c0_38 = arith.constant 0 : index
    %96 = vector.load %arg5[%c0_37, %c0_38] : memref<4x1xf32, #tpu.memory_space<vmem>>, vector<4x1xf32>
    tpu.vector_store %arg5[%c0_37, %c0_38], %95 {strides = array<i32>} : memref<4x1xf32, #tpu.memory_space<vmem>>, vector<4x1xf32>,
    %97 = vector.extract_strided_slice %80 {offsets = [0, 511], sizes = [4, 1], strides = [1, 1]} : vector<4x512xf32> to vector<4x1xf32>
    %c0_39 = arith.constant 0 : index
    %c0_40 = arith.constant 0 : index
    %98 = vector.load %arg6[%c0_39, %c0_40] : memref<4x1xf32, #tpu.memory_space<vmem>>, vector<4x1xf32>
    tpu.vector_store %arg6[%c0_39, %c0_40], %97 {strides = array<i32>} : memref<4x1xf32, #tpu.memory_space<vmem>>, vector<4x1xf32>,
    %c0_i32_41 = arith.constant 0 : i32
    %99 = arith.cmpi eq, %arg0, %c0_i32_41 : i32
    %100 = arith.extui %99 : i1 to i32
    %c0_i32_42 = arith.constant 0 : i32
    %101 = arith.cmpi ne, %100, %c0_i32_42 : i32
    scf.if %101 {
      %cst_43 = arith.constant 0.000000e+00 : f32
      %102 = vector.broadcast %cst_43 : f32 to vector<4x1xf32>
      %103 = arith.cmpf ogt, %7, %102 : vector<4x1xf32>
      %104 = arith.extui %103 : vector<4x1xi1> to vector<4x1xi32>
      %105 = arith.sitofp %104 : vector<4x1xi32> to vector<4x1xf32>
      %c0_44 = arith.constant 0 : index
      %c0_45 = arith.constant 0 : index
      %106 = vector.load %arg7[%c0_44, %c0_45] : memref<4x1xf32, #tpu.memory_space<vmem>>, vector<4x1xf32>
      %107 = arith.mulf %106, %105 : vector<4x1xf32>
      %108 = vector.shape_cast %107 : vector<4x1xf32> to vector<1x4x1xf32>
      %cst_46 = arith.constant dense<0.000000e+00> : vector<1xf32>
      %109 = vector.multi_reduction <add>, %108, %cst_46 [1, 2] : vector<1x4x1xf32> to vector<1xf32>
      %110 = vector.shape_cast %109 : vector<1xf32> to vector<1x1x1xf32>
      %111 = vector.extract %110[0, 0, 0] : f32 from vector<1x1x1xf32>
      %112 = vector.shape_cast %105 : vector<4x1xf32> to vector<1x4x1xf32>
      %cst_47 = arith.constant dense<0.000000e+00> : vector<1xf32>
      %113 = vector.multi_reduction <add>, %112, %cst_47 [1, 2] : vector<1x4x1xf32> to vector<1xf32>
      %114 = vector.shape_cast %113 : vector<1xf32> to vector<1x1x1xf32>
      %115 = vector.extract %114[0, 0, 0] : f32 from vector<1x1x1xf32>
      %cst_48 = arith.constant 0.000000e+00 : f32
      %116 = arith.cmpf ogt, %115, %cst_48 : f32
      %117 = arith.divf %111, %115 : f32
      %cst_49 = arith.constant 0.000000e+00 : f32
      %118 = arith.select %116, %117, %cst_49 : f32
      %119 = vector.broadcast %118 : f32 to vector<1x1xf32>
      %c0_50 = arith.constant 0 : index
      %c0_51 = arith.constant 0 : index
      %120 = vector.load %arg4[%c0_50, %c0_51] : memref<1x1xf32, #tpu.memory_space<vmem>>, vector<1x1xf32>
      tpu.vector_store %arg4[%c0_50, %c0_51], %119 {strides = array<i32>} : memref<1x1xf32, #tpu.memory_space<vmem>>, vector<1x1xf32>,
    } else {
    }
    return
  }
  func.func @transform_0(%arg0: i32) -> (i32, i32) {
    %c0_i32 = arith.constant 0 : i32
    %c0_i32_0 = arith.constant 0 : i32
    %c0_i32_1 = arith.constant 0 : i32
    return %c0_i32, %c0_i32_0 : i32, i32
  }
  func.func @transform_1(%arg0: i32) -> (i32, i32) {
    %c0_i32 = arith.constant 0 : i32
    %c0_i32_0 = arith.constant 0 : i32
    return %c0_i32, %arg0 : i32, i32
  }
  func.func @transform_2(%arg0: i32) -> (i32, i32) {
    %c0_i32 = arith.constant 0 : i32
    %c0_i32_0 = arith.constant 0 : i32
    return %c0_i32, %arg0 : i32, i32
  }
  func.func @transform_3(%arg0: i32) -> (i32, i32) {
    %c0_i32 = arith.constant 0 : i32
    %c0_i32_0 = arith.constant 0 : i32
    %c0_i32_1 = arith.constant 0 : i32
    return %c0_i32, %c0_i32_0 : i32, i32
  }
}

</mosaic_0001>

<llo_original>
// kernel: eq.12
$region0: #{eq.12}
  %s0 = inlined_call_operand.vmem [shape: s32[2,16,16], index: 0, kind: input, shape index: {}]
  %s1 = inlined_call_operand.vmem [shape: s32[512], index: 1, kind: output, shape index: {}]
  $region1: #{eq.12} parent=0
    #allocation0 [shape = 'u8[4096]{0}', space=vmem, size = 0x1000, scoped, tag = 'scoped mem for output reshape']
    %v2 = vld [vmem:[%s0] ss:$8 sm:$0xf]
    %vm3 = vcmask 130048
    %4 = vst.msk [vmem:[#allocation0] sm:$0xf] %vm3, %v2
    %s5 = scalar_lea.vmem %s0, 7
    %v6 = vld [vmem:[%s5] ss:$8 sm:$0xf]
    %7 = vrot.lane.b32.xlu0 %v6, 112
    %v8 = vpop.permute.xlu0 %7
    %vm9 = vcmask 1048448
    %10 = vst.msk [vmem:[#allocation0] sm:$0xf] %vm9, %v8
    %s11 = scalar_lea.vmem %s0, 6
    %v12 = vld [vmem:[%s11] ss:$8 sm:$0xf]
    %13 = vrot.lane.b32.xlu0 %v12, 96
    %v14 = vpop.permute.xlu0 %13
    %vm15 = vcmask 917248
    %16 = vst.msk [vmem:[#allocation0] sm:$0xf] %vm15, %v14
    %s17 = scalar_lea.vmem %s0, 5
    %v18 = vld [vmem:[%s17] ss:$8 sm:$0xf]
    %19 = vrot.lane.b32.xlu0 %v18, 80
    %v20 = vpop.permute.xlu0 %19
    %vm21 = vcmask 786048
    %22 = vst.msk [vmem:[#allocation0] sm:$0xf] %vm21, %v20
    %s23 = scalar_lea.vmem %s0, 4
    %v24 = vld [vmem:[%s23] ss:$8 sm:$0xf]
    %25 = vrot.lane.b32.xlu0 %v24, 64
    %v26 = vpop.permute.xlu0 %25
    %vm27 = vcmask 654848
    %28 = vst.msk [vmem:[#allocation0] sm:$0xf] %vm27, %v26
    %s29 = scalar_lea.vmem %s0, 3
    %v30 = vld [vmem:[%s29] ss:$8 sm:$0xf]
    %31 = vrot.lane.b32.xlu0 %v30, 48
    %v32 = vpop.permute.xlu0 %31
    %vm33 = vcmask 523648
    %34 = vst.msk [vmem:[#allocation0] sm:$0xf] %vm33, %v32
    %s35 = scalar_lea.vmem %s0, 2
    %v36 = vld [vmem:[%s35] ss:$8 sm:$0xf]
    %37 = vrot.lane.b32.xlu0 %v36, 32
    %v38 = vpop.permute.xlu0 %37
    %vm39 = vcmask 392448
    %40 = vst.msk [vmem:[#allocation0] sm:$0xf] %vm39, %v38
    %s41 = scalar_lea.vmem %s0, 1
    %v42 = vld [vmem:[%s41] ss:$8 sm:$0xf]
    %43 = vrot.lane.b32.xlu0 %v42, 16
    %v44 = vpop.permute.xlu0 %43
    %vm45 = vcmask 261248
    %46 = vst.msk [vmem:[#allocation0] sm:$0xf] %vm45, %v44
    %s48 = sshll.u32 1, 4
    %s49 = ssub.s32 %s48, 1
    %v51 = vld [vmem:[#allocation0] sm:%s49]
    %s52 = sshll.u32 1, 4
    %s53 = ssub.s32 %s52, 1
    %54 = vst [vmem:[%s1] sm:%s53] %v51

// kernel: lovasz_loss.1
$region0: #{lovasz_loss.1}
  #allocation0 [shape = 'u32[]', space=smem, size = 0x4, offset = 0x4, fixed_abs, tag = 'smem constant byte address 0x4 - core index']
  #allocation1 [shape = 'u32[144,128]{1,0:T(1,128)}', space=vmem, size = 0x12000, scoped, tag = 'internal scratch']
  #allocation2 [shape = 'f32[4,1]{1,0:T(4,128)}', space=vmem, size = 0x800, scoped, tag = 'scratch operand']
  #allocation3 [shape = 'f32[4,1]{1,0:T(4,128)}', space=vmem, size = 0x800, scoped, tag = 'scratch operand']
  #allocation4 [shape = 'f32[4,1]{1,0:T(4,128)}', space=vmem, size = 0x800, scoped, tag = 'scratch operand']
  %s0 = inlined_call_operand.vmem [shape: f32[4,1], index: 0, kind: input, shape index: {}]
  %s1 = inlined_call_operand.vmem [shape: f32[4,512], index: 1, kind: input, shape index: {}]
  %s2 = inlined_call_operand.vmem [shape: f32[4,512], index: 2, kind: input, shape index: {}]
  %s3 = inlined_call_operand.hbm [shape: f32[1,1], index: 3, kind: output, shape index: {}]
  %s4 = sld [smem:[#allocation0]]
  $region30: #{lovasz_loss.1} parent=0
    _
  %s6 = ssub.s32 1, %s4
  %s7 = scalar_select 0, %s6, %s4
  $region1: #{lovasz_loss.1} parent=0
    #allocation5 [shape = 'u8[512]{0}', space=vmem, size = 0x400, scoped, tag = 'output window, operand 0, single buffered']
    #allocation6 [shape = 's32[1]{0}', space=sflag, size = 0x4, scoped, tag = 'scoped memory for lovasz_loss.1']
    %8 = vsyncpa [#allocation6], 0
    // Predicated region
    $region2: #{lovasz_loss.1} parent=1 // pred_check
      _
    $region3: #{lovasz_loss.1} parent=1 // pred_check_branch
      %10 = sbr.rel (0) target = $region5
    $region4: #{lovasz_loss.1} parent=1 // pred_region
      _
    $region5: #{lovasz_loss.1} parent=1 // pred_fallthru
      _
    // Predicated region
    $region6: #{lovasz_loss.1} parent=1 // pred_check
      _
    $region7: #{lovasz_loss.1} parent=1 // pred_check_branch
      %12 = sbr.rel (0) target = $region9
    $region8: #{lovasz_loss.1} parent=1 // pred_region
      _
    $region9: #{lovasz_loss.1} parent=1 // pred_fallthru
      _
    // Predicated region
    $region10: #{lovasz_loss.1} parent=1 // pred_check
      _
    $region11: #{lovasz_loss.1} parent=1 // pred_check_branch
      %14 = sbr.rel (0) target = $region13
    $region12: #{lovasz_loss.1} parent=1 // pred_region
      _
    $region13: #{lovasz_loss.1} parent=1 // pred_fallthru
      _
    %p15 = scmp.eq.s32.totalorder 0, 0
    // Predicated region
    $region14: #{lovasz_loss.1} parent=1 // pred_check
      %p16 = pneg %p15
    $region15: #{lovasz_loss.1} parent=1 // pred_check_branch
      %18 = sbr.rel (%p16) target = $region17
    $region16: #{lovasz_loss.1} parent=1 // pred_region
      %vm19 = vcmask 3072
      %20 = vst.msk [vmem:[#allocation2] sm:$0xf] %vm19, 0.0
      %21 = vst.msk [vmem:[#allocation3] sm:$0xf] %vm19, 0.0
      %22 = vst.msk [vmem:[#allocation4] sm:$0xf] %vm19, 0.0
    $region17: #{lovasz_loss.1} parent=1 // pred_fallthru
      _
    %v23 = vld [vmem:[%s2] sm:$0xff]
    %v24 = vld [vmem:[%s2 + $0x8] sm:$0xff]
    %v25 = vld [vmem:[%s1] sm:$0xff]
    %v26 = vld [vmem:[%s1 + $0x8] sm:$0xff]
    %v27 = vsub.f32 0.0, %v25
    %v28 = vsub.f32 0.0, %v26
    %v29 = vld [vmem:[%s0] sm:$0xf]
    %v30 = vlaneseq
    %v31 = vand.u32 %v30, 127
    %v32 = vadd.s32 %v31, 128
    %v33 = vadd.s32 %v31, 256
    %v34 = vadd.s32 %v31, 384
    %v37 = vcombine.high %v23, %v23
    %v38 = vcombine.high %v24, %v24
    %41 = vrot.lane.b32.xlu0 %v23, 1
    %v42 = vpop.permute.xlu0 %41
    %43 = vrot.lane.b32.xlu0 %v37, 1
    %v44 = vpop.permute.xlu0 %43
    %45 = vrot.lane.b32.xlu0 %v24, 1
    %v46 = vpop.permute.xlu0 %45
    %47 = vrot.lane.b32.xlu0 %v38, 1
    %v48 = vpop.permute.xlu0 %47
    %vm49 = vcmp.lt.s32.totalorder %v31, 1
    %v50 = vsel %vm49, %v46, %v48
    %v51 = vsel %vm49, %v44, %v46
    %v52 = vsel %vm49, %v42, %v44
    %v53 = vsel %vm49, %v48, %v42
    %vm54 = vcmp.ge.s32.totalorder %v31, 1
    %vm55 = vcmp.ge.s32.totalorder %v32, 1
    %vm56 = vcmp.ge.s32.totalorder %v33, 1
    %vm57 = vcmp.ge.s32.totalorder %v34, 1
    %v58 = vsel %vm54, %v53, 0.0
    %v59 = vsel %vm55, %v52, 0.0
    %v60 = vsel %vm56, %v51, 0.0
    %v61 = vsel %vm57, %v50, 0.0
    %v66 = vcombine.low %v58, %v59
    %v67 = vcombine.low %v60, %v61
    %v70 = vadd.f32 %v23, %v66
    %v71 = vadd.f32 %v24, %v67
    %v74 = vcombine.high %v70, %v70
    %v75 = vcombine.high %v71, %v71
    %78 = vrot.lane.b32.xlu0 %v70, 2
    %v79 = vpop.permute.xlu0 %78
    %80 = vrot.lane.b32.xlu0 %v74, 2
    %v81 = vpop.permute.xlu0 %80
    %82 = vrot.lane.b32.xlu0 %v71, 2
    %v83 = vpop.permute.xlu0 %82
    %84 = vrot.lane.b32.xlu0 %v75, 2
    %v85 = vpop.permute.xlu0 %84
    %vm86 = vcmp.lt.s32.totalorder %v31, 2
    %v87 = vsel %vm86, %v83, %v85
    %v88 = vsel %vm86, %v81, %v83
    %v89 = vsel %vm86, %v79, %v81
    %v90 = vsel %vm86, %v85, %v79
    %vm91 = vcmp.ge.s32.totalorder %v31, 2
    %vm92 = vcmp.ge.s32.totalorder %v32, 2
    %vm93 = vcmp.ge.s32.totalorder %v33, 2
    %vm94 = vcmp.ge.s32.totalorder %v34, 2
    %v95 = vsel %vm91, %v90, 0.0
    %v96 = vsel %vm92, %v89, 0.0
    %v97 = vsel %vm93, %v88, 0.0
    %v98 = vsel %vm94, %v87, 0.0
    %v103 = vcombine.low %v95, %v96
    %v104 = vcombine.low %v97, %v98
    %v107 = vadd.f32 %v70, %v103
    %v108 = vadd.f32 %v71, %v104
    %v111 = vcombine.high %v107, %v107
    %v112 = vcombine.high %v108, %v108
    %115 = vrot.lane.b32.xlu0 %v107, 4
    %v116 = vpop.permute.xlu0 %115
    %117 = vrot.lane.b32.xlu0 %v111, 4
    %v118 = vpop.permute.xlu0 %117
    %119 = vrot.lane.b32.xlu0 %v108, 4
    %v120 = vpop.permute.xlu0 %119
    %121 = vrot.lane.b32.xlu0 %v112, 4
    %v122 = vpop.permute.xlu0 %121
    %vm123 = vcmp.lt.s32.totalorder %v31, 4
    %v124 = vsel %vm123, %v120, %v122
    %v125 = vsel %vm123, %v118, %v120
    %v126 = vsel %vm123, %v116, %v118
    %v127 = vsel %vm123, %v122, %v116
    %vm128 = vcmp.ge.s32.totalorder %v31, 4
    %vm129 = vcmp.ge.s32.totalorder %v32, 4
    %vm130 = vcmp.ge.s32.totalorder %v33, 4
    %vm131 = vcmp.ge.s32.totalorder %v34, 4
    %v132 = vsel %vm128, %v127, 0.0
    %v133 = vsel %vm129, %v126, 0.0
    %v134 = vsel %vm130, %v125, 0.0
    %v135 = vsel %vm131, %v124, 0.0
    %v140 = vcombine.low %v132, %v133
    %v141 = vcombine.low %v134, %v135
    %v144 = vadd.f32 %v107, %v140
    %v145 = vadd.f32 %v108, %v141
    %v148 = vcombine.high %v144, %v144
    %v149 = vcombine.high %v145, %v145
    %152 = vrot.lane.b32.xlu0 %v144, 8
    %v153 = vpop.permute.xlu0 %152
    %154 = vrot.lane.b32.xlu0 %v148, 8
    %v155 = vpop.permute.xlu0 %154
    %156 = vrot.lane.b32.xlu0 %v145, 8
    %v157 = vpop.permute.xlu0 %156
    %158 = vrot.lane.b32.xlu0 %v149, 8
    %v159 = vpop.permute.xlu0 %158
    %vm160 = vcmp.lt.s32.totalorder %v31, 8
    %v161 = vsel %vm160, %v157, %v159
    %v162 = vsel %vm160, %v155, %v157
    %v163 = vsel %vm160, %v153, %v155
    %v164 = vsel %vm160, %v159, %v153
    %vm165 = vcmp.ge.s32.totalorder %v31, 8
    %vm166 = vcmp.ge.s32.totalorder %v32, 8
    %vm167 = vcmp.ge.s32.totalorder %v33, 8
    %vm168 = vcmp.ge.s32.totalorder %v34, 8
    %v169 = vsel %vm165, %v164, 0.0
    %v170 = vsel %vm166, %v163, 0.0
    %v171 = vsel %vm167, %v162, 0.0
    %v172 = vsel %vm168, %v161, 0.0
    %v177 = vcombine.low %v169, %v170
    %v178 = vcombine.low %v171, %v172
    %v181 = vadd.f32 %v144, %v177
    %v182 = vadd.f32 %v145, %v178
    %v185 = vcombine.high %v181, %v181
    %v186 = vcombine.high %v182, %v182
    %189 = vrot.lane.b32.xlu0 %v181, 16
    %v190 = vpop.permute.xlu0 %189
    %191 = vrot.lane.b32.xlu0 %v185, 16
    %v192 = vpop.permute.xlu0 %191
    %193 = vrot.lane.b32.xlu0 %v182, 16
    %v194 = vpop.permute.xlu0 %193
    %195 = vrot.lane.b32.xlu0 %v186, 16
    %v196 = vpop.permute.xlu0 %195
    %vm197 = vcmp.lt.s32.totalorder %v31, 16
    %v198 = vsel %vm197, %v194, %v196
    %v199 = vsel %vm197, %v192, %v194
    %v200 = vsel %vm197, %v190, %v192
    %v201 = vsel %vm197, %v196, %v190
    %vm202 = vcmp.ge.s32.totalorder %v31, 16
    %vm203 = vcmp.ge.s32.totalorder %v32, 16
    %vm204 = vcmp.ge.s32.totalorder %v33, 16
    %vm205 = vcmp.ge.s32.totalorder %v34, 16
    %v206 = vsel %vm202, %v201, 0.0
    %v207 = vsel %vm203, %v200, 0.0
    %v208 = vsel %vm204, %v199, 0.0
    %v209 = vsel %vm205, %v198, 0.0
    %v214 = vcombine.low %v206, %v207
    %v215 = vcombine.low %v208, %v209
    %v218 = vadd.f32 %v181, %v214
    %v219 = vadd.f32 %v182, %v215
    %v222 = vcombine.high %v218, %v218
    %v223 = vcombine.high %v219, %v219
    %226 = vrot.lane.b32.xlu0 %v218, 32
    %v227 = vpop.permute.xlu0 %226
    %228 = vrot.lane.b32.xlu0 %v222, 32
    %v229 = vpop.permute.xlu0 %228
    %230 = vrot.lane.b32.xlu0 %v219, 32
    %v231 = vpop.permute.xlu0 %230
    %232 = vrot.lane.b32.xlu0 %v223, 32
    %v233 = vpop.permute.xlu0 %232
    %vm234 = vcmp.lt.s32.totalorder %v31, 32
    %v235 = vsel %vm234, %v231, %v233
    %v236 = vsel %vm234, %v229, %v231
    %v237 = vsel %vm234, %v227, %v229
    %v238 = vsel %vm234, %v233, %v227
    %vm239 = vcmp.ge.s32.totalorder %v31, 32
    %vm240 = vcmp.ge.s32.totalorder %v32, 32
    %vm241 = vcmp.ge.s32.totalorder %v33, 32
    %vm242 = vcmp.ge.s32.totalorder %v34, 32
    %v243 = vsel %vm239, %v238, 0.0
    %v244 = vsel %vm240, %v237, 0.0
    %v245 = vsel %vm241, %v236, 0.0
    %v246 = vsel %vm242, %v235, 0.0
    %v251 = vcombine.low %v243, %v244
    %v252 = vcombine.low %v245, %v246
    %v255 = vadd.f32 %v218, %v251
    %v256 = vadd.f32 %v219, %v252
    %v259 = vcombine.high %v255, %v255
    %v260 = vcombine.high %v256, %v256
    %263 = vrot.lane.b32.xlu0 %v255, 64
    %v264 = vpop.permute.xlu0 %263
    %265 = vrot.lane.b32.xlu0 %v259, 64
    %v266 = vpop.permute.xlu0 %265
    %267 = vrot.lane.b32.xlu0 %v256, 64
    %v268 = vpop.permute.xlu0 %267
    %269 = vrot.lane.b32.xlu0 %v260, 64
    %v270 = vpop.permute.xlu0 %269
    %vm271 = vcmp.lt.s32.totalorder %v31, 64
    %v272 = vsel %vm271, %v268, %v270
    %v273 = vsel %vm271, %v266, %v268
    %v274 = vsel %vm271, %v264, %v266
    %v275 = vsel %vm271, %v270, %v264
    %vm276 = vcmp.ge.s32.totalorder %v31, 64
    %vm277 = vcmp.ge.s32.totalorder %v32, 64
    %vm278 = vcmp.ge.s32.totalorder %v33, 64
    %vm279 = vcmp.ge.s32.totalorder %v34, 64
    %v280 = vsel %vm276, %v275, 0.0
    %v281 = vsel %vm277, %v274, 0.0
    %v282 = vsel %vm278, %v273, 0.0
    %v283 = vsel %vm279, %v272, 0.0
    %v288 = vcombine.low %v280, %v281
    %v289 = vcombine.low %v282, %v283
    %v292 = vadd.f32 %v255, %v288
    %v293 = vadd.f32 %v256, %v289
    %v296 = vcombine.high %v292, %v292
    %v297 = vcombine.high %v293, %v293
    %vm300 = vcmp.ge.s32.totalorder %v31, 128
    %vm301 = vcmp.ge.s32.totalorder %v32, 128
    %vm302 = vcmp.ge.s32.totalorder %v33, 128
    %vm303 = vcmp.ge.s32.totalorder %v34, 128
    %v304 = vsel %vm300, %v297, 0.0
    %v305 = vsel %vm301, %v292, 0.0
    %v306 = vsel %vm302, %v296, 0.0
    %v307 = vsel %vm303, %v293, 0.0
    %v312 = vcombine.low %v304, %v305
    %v313 = vcombine.low %v306, %v307
    %v316 = vadd.f32 %v292, %v312
    %v317 = vadd.f32 %v293, %v313
    %v320 = vcombine.high %v316, %v316
    %v321 = vcombine.high %v317, %v317
    %vm324 = vcmp.ge.s32.totalorder %v31, 256
    %vm325 = vcmp.ge.s32.totalorder %v32, 256
    %vm326 = vcmp.ge.s32.totalorder %v33, 256
    %vm327 = vcmp.ge.s32.totalorder %v34, 256
    %v328 = vsel %vm324, %v317, 0.0
    %v329 = vsel %vm325, %v321, 0.0
    %v330 = vsel %vm326, %v316, 0.0
    %v331 = vsel %vm327, %v320, 0.0
    %v336 = vcombine.low %v328, %v329
    %v337 = vcombine.low %v330, %v331
    %v340 = vadd.f32 %v316, %v336
    %v341 = vadd.f32 %v317, %v337
    %v342 = vld [vmem:[#allocation2] sm:$0xf]
    %344 = vset.pattern.permute.xlu0 0
    %345 = vperm.xlu0 %344, %v342
    %v346 = vpop.permute.xlu0 %345
    %v350 = vcombine.high %v340, %v340
    %v351 = vcombine.high %v341, %v341
    %v354 = vadd.f32 %v346, %v340
    %v355 = vadd.f32 %v346, %v350
    %v356 = vadd.f32 %v346, %v341
    %v357 = vadd.f32 %v346, %v351
    %s358 = smul.u32 0, 512
    %v359 = vstv %s358
    %v360 = vadd.s32 %v359, %v31
    %v361 = vadd.s32 %v359, %v32
    %v362 = vadd.s32 %v359, %v33
    %v363 = vadd.s32 %v359, %v34
    %v364 = vadd.s32 %v360, 1
    %v365 = vadd.s32 %v361, 1
    %v366 = vadd.s32 %v362, 1
    %v367 = vadd.s32 %v363, 1
    %v368 = vcvt.s32.f32 %v364
    %v369 = vcvt.s32.f32 %v365
    %v370 = vcvt.s32.f32 %v366
    %v371 = vcvt.s32.f32 %v367
    %373 = vset.pattern.permute.xlu0 0
    %374 = vperm.xlu0 %373, %v29
    %v375 = vpop.permute.xlu0 %374
    %v377 = vsub.f32 %v375, %v354
    %v378 = vsub.f32 %v375, %v355
    %v379 = vsub.f32 %v375, %v356
    %v380 = vsub.f32 %v375, %v357
    %v381 = vsub.f32 %v368, %v354
    %v382 = vsub.f32 %v369, %v355
    %v383 = vsub.f32 %v370, %v356
    %v384 = vsub.f32 %v371, %v357
    %v385 = vadd.f32 %v375, %v381
    %v386 = vadd.f32 %v375, %v382
    %v387 = vadd.f32 %v375, %v383
    %v388 = vadd.f32 %v375, %v384
    %v389 = vrcp.pop %v385
    %v390 = vrcp.pop %v386
    %v391 = vrcp.pop %v387
    %v392 = vrcp.pop %v388
    %v393 = vmul.f32 %v377, %v389
    %v394 = vmul.f32 %v378, %v390
    %v395 = vmul.f32 %v379, %v391
    %v396 = vmul.f32 %v380, %v392
    %v397 = vsub.f32 1.0, %v393
    %v398 = vsub.f32 1.0, %v394
    %v399 = vsub.f32 1.0, %v395
    %v400 = vsub.f32 1.0, %v396
    %401 = vrot.lane.b32.xlu0 %v397, 1
    %v402 = vpop.permute.xlu0 %401
    %403 = vrot.lane.b32.xlu0 %v398, 1
    %v404 = vpop.permute.xlu0 %403
    %405 = vrot.lane.b32.xlu0 %v399, 1
    %v406 = vpop.permute.xlu0 %405
    %407 = vrot.lane.b32.xlu0 %v400, 1
    %v408 = vpop.permute.xlu0 %407
    %v409 = vsel %vm49, %v406, %v408
    %v410 = vsel %vm49, %v404, %v406
    %v411 = vsel %vm49, %v402, %v404
    %v412 = vsel %vm49, %v408, %v402
    %vm413 = vcmp.eq.s32.totalorder %v31, 0
    %vm414 = vcmp.eq.s32.totalorder %v32, 0
    %vm415 = vcmp.eq.s32.totalorder %v33, 0
    %vm416 = vcmp.eq.s32.totalorder %v34, 0
    %v417 = vld [vmem:[#allocation3] sm:$0xf]
    %419 = vset.pattern.permute.xlu0 0
    %420 = vperm.xlu0 %419, %v417
    %v421 = vpop.permute.xlu0 %420
    %v423 = vsel %vm413, %v421, %v412
    %v424 = vsel %vm414, %v421, %v411
    %v425 = vsel %vm415, %v421, %v410
    %v426 = vsel %vm416, %v421, %v409
    %v427 = vsub.f32 %v397, %v423
    %v428 = vsub.f32 %v398, %v424
    %v429 = vsub.f32 %v399, %v425
    %v430 = vsub.f32 %v400, %v426
    %v431 = vld [vmem:[#allocation4] sm:$0xf]
    %v436 = vcombine.low %v427, %v428
    %v437 = vcombine.low %v429, %v430
    %v440 = vmul.f32 %v27, %v436
    %v441 = vmul.f32 %v28, %v437
    %v444 = vcombine.high %v440, %v440
    %v445 = vcombine.high %v441, %v441
    %vm448 = vcmask 1043456
    %v449 = vsel %vm448, %v440, 0.0
    %v450 = vsel %vm448, %v444, 0.0
    %v451 = vadd.f32 %v449, %v450
    %v452 = vsel %vm448, %v441, 0.0
    %v453 = vadd.f32 %v451, %v452
    %v454 = vsel %vm448, %v445, 0.0
    %v455 = vadd.f32 %v453, %v454
    %456 = vadd.xlane.f32.xlu0 %v455
    %v457 = vpop.xlane.xlu0 %456
    %v458 = vadd.f32 %v431, %v457
    %vm459 = vcmask 3072
    %460 = vst.msk [vmem:[#allocation4] sm:$0xf] %vm459, %v458
    %462 = vrot.lane.b32.xlu0 %v357, 1
    %v463 = vpop.permute.xlu0 %462
    %465 = vst.msk [vmem:[#allocation2] sm:$0xf] %vm459, %v463
    %467 = vrot.lane.b32.xlu0 %v400, 1
    %v468 = vpop.permute.xlu0 %467
    %470 = vst.msk [vmem:[#allocation3] sm:$0xf] %vm459, %v468
    // Predicated region
    $region18: #{lovasz_loss.1} parent=1 // pred_check
      %p471 = pneg %p15
    $region19: #{lovasz_loss.1} parent=1 // pred_check_branch
      %473 = sbr.rel (%p471) target = $region21
    $region20: #{lovasz_loss.1} parent=1 // pred_region
      %vm474 = vcmp.gt.f32.partialorder %v29, 0.0
      %v475 = vsel %vm474, 1, 0
      %v476 = vcvt.s32.f32 %v475
      %v477 = vld [vmem:[#allocation4] sm:$0xf]
      %v478 = vmul.f32 %v477, %v476
      %v479 = vsel %vm459, %v478, 0.0
      %480 = vadd.xlane.f32.xlu0 %v479
      %v481 = vpop.xlane.xlu0 %480
      %v482 = vrot.slane %v481, 4
      %v483 = vadd.f32 %v481, %v482
      %v484 = vrot.slane %v483, 2
      %v485 = vadd.f32 %v483, %v484
      %v486 = vrot.slane %v485, 1
      %v487 = vadd.f32 %v485, %v486
      %s488 = vtos %v487
      %v489 = vsel %vm459, %v476, 0.0
      %490 = vadd.xlane.f32.xlu0 %v489
      %v491 = vpop.xlane.xlu0 %490
      %v492 = vrot.slane %v491, 4
      %v493 = vadd.f32 %v491, %v492
      %v494 = vrot.slane %v493, 2
      %v495 = vadd.f32 %v493, %v494
      %v496 = vrot.slane %v495, 1
      %v497 = vadd.f32 %v495, %v496
      %s498 = vtos %v497
      %p499 = scmp.gt.f32.partialorder %s498, 0.0
      %v500 = vstv %s498
      %v501 = vrcp.pop %v500
      %s502 = vtos %v501
      %s503 = smul.f32 %s488, %s502
      %s504 = scalar_select %p499, %s503, 0.0
      %v505 = vstv %s504
      %vm506 = vcmask 0
      %507 = vst.msk [vmem:[#allocation5] sm:$0x1] %vm506, %v505
    $region21: #{lovasz_loss.1} parent=1 // pred_fallthru
      _
    // Predicated region
    $region22: #{lovasz_loss.1} parent=1 // pred_check
      _
    $region23: #{lovasz_loss.1} parent=1 // pred_check_branch
      %509 = sbr.rel (0) target = $region25
    $region24: #{lovasz_loss.1} parent=1 // pred_region
      %s511 = ssub.s32 16, 16
      %512 = vsyncadd [#allocation6], %s511
      %s514 = sshll.u32 [#allocation5], 4
      %s515 = int_to_ptr.vmem [resolvable:$true] %s514
      %517 = dma.vmem_to_hbm [thread:$0]  %s515, 16, %s3, [#allocation6]
    $region25: #{lovasz_loss.1} parent=1 // pred_fallthru
      _
    // Predicated region
    $region26: #{lovasz_loss.1} parent=1 // pred_check
      _
    $region27: #{lovasz_loss.1} parent=1 // pred_check_branch
      %519 = sbr.rel (0) target = $region29
    $region28: #{lovasz_loss.1} parent=1 // pred_region
      %520 = dma.done [#allocation6], 16
    $region29: #{lovasz_loss.1} parent=1 // pred_fallthru
      _
    %521 = vsyncpa [#allocation6], 1

</llo_original>
